<compile_context>
chip_gen: v7x
topology: tpu7x:2x2x1
jax: 0.10.0
libtpu: 0.0.40
codegen_flags: <defaults>
</compile_context>

<pallas_src>
import functools
import math

import jax
import jax.numpy as jnp
from jax.experimental import pallas as pl
from jax.experimental.pallas import tpu as pltpu

LN_EPS = 1e-5                       # PyTorch nn.LayerNorm default eps
_VMEM_LIMIT = 64 * 1024 * 1024      # fits v5e/v6e (128 MiB) and v7x (64 MiB)


def _gelu_tanh(x):
    # TODO(synk): PyTorch nn.GELU() default is the exact erf form; erf is not a
    # guaranteed Mosaic lowering, so the tanh approximation is used (|err| ~1e-3).
    c = math.sqrt(2.0 / math.pi)
    return 0.5 * x * (1.0 + jnp.tanh(c * (x + 0.044715 * x * x * x)))


def _cparams(n_parallel=1):
    return pltpu.CompilerParams(
        dimension_semantics=("parallel",) * n_parallel,
        vmem_limit_bytes=_VMEM_LIMIT,
    )


def _round_up(x, m):
    return (x + m - 1) // m * m


def _tiles(M, tm):
    """Pick a sublane-aligned row tile and the padded row count."""
    tm = min(tm, _round_up(M, 8))
    return tm, _round_up(M, tm)


def _pad_rows(x2d, Mp):
    M = x2d.shape[0]
    if Mp == M:
        return x2d
    return jnp.pad(x2d, ((0, Mp - M), (0, 0)))


def _ln_f32(x_ref, g_ref, b_ref, eps):
    """LayerNorm of a row tile; stats in f32, returns (normalized_f32, x_f32)."""
    xf = x_ref[...].astype(jnp.float32)
    mean = jnp.mean(xf, axis=-1, keepdims=True)
    xc = xf - mean
    var = jnp.mean(xc * xc, axis=-1, keepdims=True)
    xn = xc * jax.lax.rsqrt(var + eps)
    xn = xn * g_ref[...].astype(jnp.float32) + b_ref[...].astype(jnp.float32)
    return xn, xf


# ---------------------------------------------------------------------------
# Pallas kernels
# ---------------------------------------------------------------------------
def _linear_kernel(*refs, has_res):
    """y = x @ W + b [+ residual] for one row tile (no dtype upcast before MXU)."""
    if has_res:
        x_ref, w_ref, b_ref, r_ref, o_ref = refs
    else:
        x_ref, w_ref, b_ref, o_ref = refs
    y = jnp.dot(x_ref[...], w_ref[...], preferred_element_type=jnp.float32)
    y = y + b_ref[...].astype(jnp.float32)
    if has_res:
        y = y + r_ref[...].astype(jnp.float32)
    o_ref[...] = y.astype(o_ref.dtype)


def _ln_linear_kernel(x_ref, g_ref, b_ref, w_ref, bias_ref, o_ref, *, eps):
    """y = LayerNorm(x) @ W + b  (fused LN + in_proj for the attention branch)."""
    xn, _ = _ln_f32(x_ref, g_ref, b_ref, eps)
    xn = xn.astype(w_ref.dtype)
    y = jnp.dot(xn, w_ref[...], preferred_element_type=jnp.float32)
    o_ref[...] = (y + bias_ref[...].astype(jnp.float32)).astype(o_ref.dtype)


def _ln_mlp_kernel(x_ref, g_ref, b_ref, fcw_ref, fcb_ref, pw_ref, pb_ref, o_ref, *, eps):
    """y = x + c_proj(gelu(c_fc(LayerNorm(x)))); the (tm, 4E) hidden stays in VMEM."""
    xn, xf = _ln_f32(x_ref, g_ref, b_ref, eps)
    xn = xn.astype(fcw_ref.dtype)
    ff = jnp.dot(xn, fcw_ref[...], preferred_element_type=jnp.float32)
    ff = _gelu_tanh(ff + fcb_ref[...].astype(jnp.float32)).astype(pw_ref.dtype)
    y = jnp.dot(ff, pw_ref[...], preferred_element_type=jnp.float32)
    y = y + pb_ref[...].astype(jnp.float32) + xf
    o_ref[...] = y.astype(o_ref.dtype)


def _layernorm_kernel(x_ref, g_ref, b_ref, o_ref, *, eps):
    xn, _ = _ln_f32(x_ref, g_ref, b_ref, eps)
    o_ref[...] = xn.astype(o_ref.dtype)


def _attention_kernel(qkv_ref, o_ref, *, num_heads, head_dim, scale):
    """All heads of one batch row: out[:, h*Dh:(h+1)*Dh] = softmax(q k^T) v per head.

    Head slicing happens on in-register values (static slices) and the output is
    written back as one lane-dense (S, E) store.
    """
    E = num_heads * head_dim
    qkv = qkv_ref[0]                                    # (S, 3E), native dtype
    outs = []
    for h in range(num_heads):
        lo = h * head_dim
        q = qkv[:, lo:lo + head_dim].astype(jnp.float32)
        k = qkv[:, E + lo:E + lo + head_dim].astype(jnp.float32)
        v = qkv[:, 2 * E + lo:2 * E + lo + head_dim].astype(jnp.float32)
        # Contract last dims (no explicit k transpose materialized).
        s = jax.lax.dot_general(q, k, (((1,), (1,)), ((), ())),
                                preferred_element_type=jnp.float32) * scale
        s = s - jnp.max(s, axis=-1, keepdims=True)      # stable softmax
        p = jnp.exp(s)
        p = p * pl.reciprocal(jnp.sum(p, axis=-1, keepdims=True), approx=True)
        outs.append(jnp.dot(p, v, preferred_element_type=jnp.float32))
    # TODO(synk): for long sequences (S >~ 2k) switch to a kv-tiled flash-style
    # online-softmax loop so the (S, S) score matrix never exceeds v7x VMEM.
    o_ref[0] = jnp.concatenate(outs, axis=-1).astype(o_ref.dtype)


# ---------------------------------------------------------------------------
# pallas_call wrappers
# ---------------------------------------------------------------------------
def linear(x2d, w, b, residual=None, tm=256):
    M, K = x2d.shape
    Kw, N = w.shape
    assert K == Kw
    tm, Mp = _tiles(M, tm)
    args = [_pad_rows(x2d, Mp), w, b.reshape(1, N)]
    in_specs = [
        pl.BlockSpec((tm, K), lambda i: (i, 0)),   # row tile of activations
        pl.BlockSpec((K, N), lambda i: (0, 0)),    # full weight resident in VMEM
        pl.BlockSpec((1, N), lambda i: (0, 0)),    # bias
    ]
    if residual is not None:
        args.append(_pad_rows(residual, Mp))
        in_specs.append(pl.BlockSpec((tm, N), lambda i: (i, 0)))
    out = pl.pallas_call(
        functools.partial(_linear_kernel, has_res=residual is not None),
        out_shape=jax.ShapeDtypeStruct((Mp, N), x2d.dtype),
        grid=(Mp // tm,),
        in_specs=in_specs,
        out_specs=pl.BlockSpec((tm, N), lambda i: (i, 0)),
        compiler_params=_cparams(1),
    )(*args)
    return out[:M] if Mp != M else out


def ln_linear(x2d, gamma, beta, w, b, tm=256):
    M, E = x2d.shape
    Ew, N = w.shape
    assert E == Ew
    tm, Mp = _tiles(M, tm)
    out = pl.pallas_call(
        functools.partial(_ln_linear_kernel, eps=LN_EPS),
        out_shape=jax.ShapeDtypeStruct((Mp, N), x2d.dtype),
        grid=(Mp // tm,),
        in_specs=[
            pl.BlockSpec((tm, E), lambda i: (i, 0)),
            pl.BlockSpec((1, E), lambda i: (0, 0)),
            pl.BlockSpec((1, E), lambda i: (0, 0)),
            pl.BlockSpec((E, N), lambda i: (0, 0)),
            pl.BlockSpec((1, N), lambda i: (0, 0)),
        ],
        out_specs=pl.BlockSpec((tm, N), lambda i: (i, 0)),
        compiler_params=_cparams(1),
    )(_pad_rows(x2d, Mp), gamma.reshape(1, E), beta.reshape(1, E), w, b.reshape(1, N))
    return out[:M] if Mp != M else out


def ln_mlp(x2d, gamma, beta, fc_w, fc_b, proj_w, proj_b, tm=256):
    M, E = x2d.shape
    _, H = fc_w.shape
    tm, Mp = _tiles(M, tm)
    # TODO(synk): for very large E on v7x, single-buffer the constant weight blocks
    # (pipeline_mode=pl.Buffered(1)) or tile the 4E hidden dim to stay inside 64 MiB.
    out = pl.pallas_call(
        functools.partial(_ln_mlp_kernel, eps=LN_EPS),
        out_shape=jax.ShapeDtypeStruct((Mp, E), x2d.dtype),
        grid=(Mp // tm,),
        in_specs=[
            pl.BlockSpec((tm, E), lambda i: (i, 0)),
            pl.BlockSpec((1, E), lambda i: (0, 0)),
            pl.BlockSpec((1, E), lambda i: (0, 0)),
            pl.BlockSpec((E, H), lambda i: (0, 0)),
            pl.BlockSpec((1, H), lambda i: (0, 0)),
            pl.BlockSpec((H, E), lambda i: (0, 0)),
            pl.BlockSpec((1, E), lambda i: (0, 0)),
        ],
        out_specs=pl.BlockSpec((tm, E), lambda i: (i, 0)),
        compiler_params=_cparams(1),
    )(_pad_rows(x2d, Mp), gamma.reshape(1, E), beta.reshape(1, E),
      fc_w, fc_b.reshape(1, H), proj_w, proj_b.reshape(1, E))
    return out[:M] if Mp != M else out


def layernorm(x2d, gamma, beta, tm=256):
    M, E = x2d.shape
    tm, Mp = _tiles(M, tm)
    out = pl.pallas_call(
        functools.partial(_layernorm_kernel, eps=LN_EPS),
        out_shape=jax.ShapeDtypeStruct((Mp, E), x2d.dtype),
        grid=(Mp // tm,),
        in_specs=[
            pl.BlockSpec((tm, E), lambda i: (i, 0)),
            pl.BlockSpec((1, E), lambda i: (0, 0)),
            pl.BlockSpec((1, E), lambda i: (0, 0)),
        ],
        out_specs=pl.BlockSpec((tm, E), lambda i: (i, 0)),
        compiler_params=_cparams(1),
    )(_pad_rows(x2d, Mp), gamma.reshape(1, E), beta.reshape(1, E))
    return out[:M] if Mp != M else out


def attention(qkv3d, num_heads, head_dim):
    """qkv3d: (B, S, 3E) fused projections -> (B, S, E) head-concatenated output."""
    B, S, threeE = qkv3d.shape
    E = num_heads * head_dim
    assert threeE == 3 * E
    return pl.pallas_call(
        functools.partial(_attention_kernel, num_heads=num_heads,
                          head_dim=head_dim, scale=1.0 / math.sqrt(head_dim)),
        out_shape=jax.ShapeDtypeStruct((B, S, E), qkv3d.dtype),
        grid=(B,),
        in_specs=[pl.BlockSpec((1, S, threeE), lambda b: (b, 0, 0))],
        out_specs=pl.BlockSpec((1, S, E), lambda b: (b, 0, 0)),
        compiler_params=_cparams(1),
    )(qkv3d)


# ---------------------------------------------------------------------------
# Model forward (glue in plain JAX, compute in Pallas kernels)
# ---------------------------------------------------------------------------
def transformer_encoder_forward(params, x, num_heads, tm=256):
    B, S, Din = x.shape
    E = params["emb_w"].shape[1]
    Dh = E // num_heads
    M = B * S

    # embeddings: Linear(block_size -> E); Dropout(embed_pdrop) is identity in eval
    h = linear(x.reshape(M, Din), params["emb_w"], params["emb_b"], tm=tm)

    for blk in params["blocks"]:
        # ---- attention branch: x = x + out_proj(attn_heads(in_proj(ln_1(x)))) ----
        qkv = ln_linear(h, blk["ln1_g"], blk["ln1_b"], blk["w_qkv"], blk["b_qkv"], tm=tm)
        a = attention(qkv.reshape(B, S, 3 * E), num_heads, Dh)          # (B, S, E)
        h = linear(a.reshape(M, E), blk["w_out"], blk["b_out"], residual=h, tm=tm)

        # ---- MLP branch (fully fused): x = x + c_proj(gelu(c_fc(ln_2(x)))) ----
        h = ln_mlp(h, blk["ln2_g"], blk["ln2_b"], blk["fc_w"], blk["fc_b"],
                   blk["proj_w"], blk["proj_b"], tm=tm)

    h = layernorm(h, params["lnf_g"], params["lnf_b"], tm=tm)
    return h.reshape(B, S, E)


# ---------------------------------------------------------------------------
# Deterministic parameter init (shapes follow the PyTorch module __init__)
# ---------------------------------------------------------------------------
def init_params(key, cfg):
    E, Din, L = cfg["embed_dim"], cfg["block_size"], cfg["num_layers"]

    def dense(k, fan_in, fan_out):
        kw, kb = jax.random.split(k)
        w = jax.random.normal(kw, (fan_in, fan_out), jnp.float32) * 0.02
        b = jax.random.normal(kb, (fan_out,), jnp.float32) * 0.02
        return w, b

    keys = jax.random.split(key, L + 1)
    emb_w, emb_b = dense(keys[0], Din, E)
    blocks = []
    for l in range(L):
        k = jax.random.split(keys[l + 1], 4)
        w_qkv, b_qkv = dense(k[0], E, 3 * E)        # MultiheadAttention in_proj
        w_out, b_out = dense(k[1], E, E)            # MultiheadAttention out_proj
        fc_w, fc_b = dense(k[2], E, 4 * E)          # mlp.c_fc
        proj_w, proj_b = dense(k[3], 4 * E, E)      # mlp.c_proj
        blocks.append(dict(
            ln1_g=jnp.ones((E,), jnp.float32), ln1_b=jnp.zeros((E,), jnp.float32),
            w_qkv=w_qkv, b_qkv=b_qkv, w_out=w_out, b_out=b_out,
            ln2_g=jnp.ones((E,), jnp.float32), ln2_b=jnp.zeros((E,), jnp.float32),
            fc_w=fc_w, fc_b=fc_b, proj_w=proj_w, proj_b=proj_b,
        ))
    return dict(emb_w=emb_w, emb_b=emb_b, blocks=blocks,
                lnf_g=jnp.ones((E,), jnp.float32), lnf_b=jnp.zeros((E,), jnp.float32))


# ---------------------------------------------------------------------------
# Pure-JAX reference (same math) for a sanity check
# ---------------------------------------------------------------------------
def reference_forward(params, x, num_heads):
    B, S, _ = x.shape
    E = params["emb_w"].shape[1]
    Dh = E // num_heads

    def ln(t, g, b):
        mu = t.mean(-1, keepdims=True)
        var = ((t - mu) ** 2).mean(-1, keepdims=True)
        return (t - mu) / jnp.sqrt(var + LN_EPS) * g + b

    h = x @ params["emb_w"] + params["emb_b"]
    for blk in params["blocks"]:
        hn = ln(h, blk["ln1_g"], blk["ln1_b"])
        qkv = hn @ blk["w_qkv"] + blk["b_qkv"]
        q, k, v = jnp.split(qkv, 3, axis=-1)

        def heads(t):
            return t.reshape(B, S, num_heads, Dh).transpose(0, 2, 1, 3)

        q, k, v = heads(q), heads(k), heads(v)
        s = jnp.einsum("bhqd,bhkd->bhqk", q, k) / math.sqrt(Dh)
        p = jax.nn.softmax(s, axis=-1)
        a = jnp.einsum("bhqk,bhkd->bhqd", p, v).transpose(0, 2, 1, 3).reshape(B, S, E)
        h = h + (a @ blk["w_out"] + blk["b_out"])
        hn = ln(h, blk["ln2_g"], blk["ln2_b"])
        ff = _gelu_tanh(hn @ blk["fc_w"] + blk["fc_b"])
        h = h + (ff @ blk["proj_w"] + blk["proj_b"])
    return ln(h, params["lnf_g"], params["lnf_b"])


if __name__ == "__main__":
    cfg = dict(block_size=16, max_blocks=4, num_layers=2, num_heads=4,
               embed_dim=32, attention="self", mlp_size=128,
               embed_pdrop=0.0, resid_pdrop=0.0, attn_pdrop=0.0)
    key = jax.random.PRNGKey(0)
    pkey, xkey = jax.random.split(key)
    params = init_params(pkey, cfg)

    B, S = 2, 8
    x = jax.random.normal(xkey, (B, S, cfg["block_size"]), jnp.float32)

    out = transformer_encoder_forward(params, x, cfg["num_heads"])
    out = jax.block_until_ready(out)
    assert out.shape == (B, S, cfg["embed_dim"])

    with jax.default_matmul_precision("float32"):
        ref = jax.block_until_ready(reference_forward(params, x, cfg["num_heads"]))
    err = float(jnp.max(jnp.abs(out - ref)))
    assert err < 1e-2, f"max abs error vs reference too large: {err}"

    print("KERNEL_OK")
</pallas_src>

<mosaic_0001>
module attributes {stable_mosaic.version = 11 : i64} {
  func.func @_linear_kernel(%arg0: i32, %arg1: memref<16x16xf32, #tpu.memory_space<vmem>>, %arg2: memref<16x32xf32, #tpu.memory_space<vmem>>, %arg3: memref<1x32xf32, #tpu.memory_space<vmem>>, %arg4: memref<16x32xf32, #tpu.memory_space<vmem>>) attributes {dimension_semantics = [#tpu.dimension_semantics<parallel>], iteration_bounds = array<i64: 1>, scalar_prefetch = 0 : i64, scratch_operands = 0 : i64, tpu.core_type = #tpu.core_type<tc>, window_params = [{transform_indices = @transform_0, window_bounds = array<i64: 16, 16>}, {pipeline_mode = #tpu.pipeline_mode<synchronous>, transform_indices = @transform_1, window_bounds = array<i64: 16, 32>}, {pipeline_mode = #tpu.pipeline_mode<synchronous>, transform_indices = @transform_2, window_bounds = array<i64: 1, 32>}, {transform_indices = @transform_3, window_bounds = array<i64: 16, 32>}]} {
    %c0 = arith.constant 0 : index
    %c0_0 = arith.constant 0 : index
    %0 = vector.load %arg1[%c0, %c0_0] : memref<16x16xf32, #tpu.memory_space<vmem>>, vector<16x16xf32>
    %c0_1 = arith.constant 0 : index
    %c0_2 = arith.constant 0 : index
    %1 = vector.load %arg2[%c0_1, %c0_2] : memref<16x32xf32, #tpu.memory_space<vmem>>, vector<16x32xf32>
    %cst = arith.constant dense<0.000000e+00> : vector<16x32xf32>
    %2 = tpu.matmul %0, %1, %cst {dimension_numbers = #tpu.dot_dimension_numbers<[1], [0], [0], [1], [0, 0, 1, 1], [], []>} : vector<16x16xf32>, vector<16x32xf32>, vector<16x32xf32> -> vector<16x32xf32>
    %c0_3 = arith.constant 0 : index
    %c0_4 = arith.constant 0 : index
    %3 = vector.load %arg3[%c0_3, %c0_4] : memref<1x32xf32, #tpu.memory_space<vmem>>, vector<1x32xf32>
    %4 = vector.broadcast %3 : vector<1x32xf32> to vector<16x32xf32>
    %5 = arith.addf %2, %4 : vector<16x32xf32>
    %c0_5 = arith.constant 0 : index
    %c0_6 = arith.constant 0 : index
    %6 = vector.load %arg4[%c0_5, %c0_6] : memref<16x32xf32, #tpu.memory_space<vmem>>, vector<16x32xf32>
    tpu.vector_store %arg4[%c0_5, %c0_6], %5 {strides = array<i32>} : memref<16x32xf32, #tpu.memory_space<vmem>>, vector<16x32xf32>,
    return
  }
  func.func @transform_0(%arg0: i32) -> (i32, i32) {
    %c0_i32 = arith.constant 0 : i32
    %c0_i32_0 = arith.constant 0 : i32
    return %arg0, %c0_i32 : i32, i32
  }
  func.func @transform_1(%arg0: i32) -> (i32, i32) {
    %c0_i32 = arith.constant 0 : i32
    %c0_i32_0 = arith.constant 0 : i32
    %c0_i32_1 = arith.constant 0 : i32
    return %c0_i32, %c0_i32_0 : i32, i32
  }
  func.func @transform_2(%arg0: i32) -> (i32, i32) {
    %c0_i32 = arith.constant 0 : i32
    %c0_i32_0 = arith.constant 0 : i32
    %c0_i32_1 = arith.constant 0 : i32
    return %c0_i32, %c0_i32_0 : i32, i32
  }
  func.func @transform_3(%arg0: i32) -> (i32, i32) {
    %c0_i32 = arith.constant 0 : i32
    %c0_i32_0 = arith.constant 0 : i32
    return %arg0, %c0_i32 : i32, i32
  }
}

</mosaic_0001>

<llo_original>
// kernel: tpu_custom_call.1
$region0: #{tpu_custom_call.1}
  #allocation0 [shape = 'u32[]', space=smem, size = 0x4, offset = 0x4, fixed_abs, tag = 'smem constant byte address 0x4 - core index']
  #allocation1 [shape = 'u32[144,128]{1,0:T(1,128)}', space=vmem, size = 0x12000, scoped, tag = 'internal scratch']
  %s0 = inlined_call_operand.hbm [shape: f32[16,16], index: 0, kind: input, shape index: {}]
  %s1 = inlined_call_operand.hbm [shape: f32[16,32], index: 1, kind: input, shape index: {}]
  %s2 = inlined_call_operand.hbm [shape: f32[1,32], index: 2, kind: input, shape index: {}]
  %s3 = inlined_call_operand.hbm [shape: f32[16,32], index: 3, kind: output, shape index: {}]
  %s4 = sld [smem:[#allocation0]]
  $region34: #{tpu_custom_call.1} parent=0
    _
  %s6 = ssub.s32 1, %s4
  %s7 = scalar_select 0, %s6, %s4
  $region1: #{tpu_custom_call.1} parent=0
    #allocation2 [shape = 'u8[8192]{0}', space=vmem, size = 0x2000, scoped, tag = 'input window, operand 0, single buffered']
    #allocation3 [shape = 's32[1]{0}', space=sflag, size = 0x4, scoped, tag = 'scoped memory for tpu_custom_call.1']
    #allocation4 [shape = 's32[1]{0}', space=sflag, size = 0x4, scoped, tag = 'scoped memory for tpu_custom_call.1']
    #allocation5 [shape = 'u8[8192]{0}', space=vmem, size = 0x2000, scoped, tag = 'input window, operand 1, single buffered']
    #allocation6 [shape = 's32[1]{0}', space=sflag, size = 0x4, scoped, tag = 'scoped memory for tpu_custom_call.1']
    #allocation7 [shape = 'u8[512]{0}', space=vmem, size = 0x400, scoped, tag = 'input window, operand 2, single buffered']
    #allocation8 [shape = 'u8[8192]{0}', space=vmem, size = 0x2000, scoped, tag = 'output window, operand 0, single buffered']
    %8 = vsyncpa [#allocation3], 0
    %9 = vsyncpa [#allocation6], 0
    %10 = vsyncpa [#allocation4], 0
    // Predicated region
    $region2: #{tpu_custom_call.1} parent=1 // pred_check
      _
    $region3: #{tpu_custom_call.1} parent=1 // pred_check_branch
      %12 = sbr.rel (0) target = $region5
    $region4: #{tpu_custom_call.1} parent=1 // pred_region
      %s14 = ssub.s32 256, 256
      %15 = vsyncadd [#allocation3], %s14
      %s16 = sshll.u32 [#allocation2], 4
      %s17 = int_to_ptr.vmem [resolvable:$true] %s16
      %22 = dma.hbm_to_vmem [thread:$0]  %s0, 256, %s17, [#allocation3], 128, 128, 8
    $region5: #{tpu_custom_call.1} parent=1 // pred_fallthru
      _
    // Predicated region
    $region6: #{tpu_custom_call.1} parent=1 // pred_check
      _
    $region7: #{tpu_custom_call.1} parent=1 // pred_check_branch
      %24 = sbr.rel (0) target = $region9
    $region8: #{tpu_custom_call.1} parent=1 // pred_region
      %s26 = ssub.s32 256, 256
      %27 = vsyncadd [#allocation6], %s26
      %s28 = sshll.u32 [#allocation5], 4
      %s29 = int_to_ptr.vmem [resolvable:$true] %s28
      %34 = dma.hbm_to_vmem [thread:$0]  %s1, 256, %s29, [#allocation6], 128, 128, 8
    $region9: #{tpu_custom_call.1} parent=1 // pred_fallthru
      _
    // Predicated region
    $region10: #{tpu_custom_call.1} parent=1 // pred_check
      _
    $region11: #{tpu_custom_call.1} parent=1 // pred_check_branch
      %36 = sbr.rel (0) target = $region13
    $region12: #{tpu_custom_call.1} parent=1 // pred_region
      %s38 = ssub.s32 16, 16
      %39 = vsyncadd [#allocation6], %s38
      %s41 = sshll.u32 [#allocation7], 4
      %s42 = int_to_ptr.vmem [resolvable:$true] %s41
      %44 = dma.hbm_to_vmem [thread:$0]  %s2, 16, %s42, [#allocation6]
    $region13: #{tpu_custom_call.1} parent=1 // pred_fallthru
      _
    // Predicated region
    $region14: #{tpu_custom_call.1} parent=1 // pred_check
      _
    $region15: #{tpu_custom_call.1} parent=1 // pred_check_branch
      %46 = sbr.rel (0) target = $region17
    $region16: #{tpu_custom_call.1} parent=1 // pred_region
      %47 = dma.done [#allocation3], 256
    $region17: #{tpu_custom_call.1} parent=1 // pred_fallthru
      _
    // Predicated region
    $region18: #{tpu_custom_call.1} parent=1 // pred_check
      _
    $region19: #{tpu_custom_call.1} parent=1 // pred_check_branch
      %49 = sbr.rel (0) target = $region21
    $region20: #{tpu_custom_call.1} parent=1 // pred_region
      %50 = dma.done [#allocation6], 256
    $region21: #{tpu_custom_call.1} parent=1 // pred_fallthru
      _
    // Predicated region
    $region22: #{tpu_custom_call.1} parent=1 // pred_check
      _
    $region23: #{tpu_custom_call.1} parent=1 // pred_check_branch
      %52 = sbr.rel (0) target = $region25
    $region24: #{tpu_custom_call.1} parent=1 // pred_region
      %53 = dma.done [#allocation6], 16
    $region25: #{tpu_custom_call.1} parent=1 // pred_fallthru
      _
    %v54 = vld [vmem:[#allocation2] sm:$0xff]
    %v55 = vld [vmem:[#allocation2 + $0x8] sm:$0xff]
    %v56 = vld [vmem:[#allocation5] sm:$0xff]
    %v57 = vld [vmem:[#allocation5 + $0x8] sm:$0xff]
    %v58 = vld [vmem:[#allocation7] sm:$0x1]
    %v60 = vlaneseq
    %v61 = vshrl.u32 %v60, 7
    %v62 = vsub.s32 0, %v61
    %v63 = vrot.slane %v58, %v62
    %vm65 = vcmask 130048
    %v67 = vsel %vm65, %v54, 0
    %v70 = vsel %vm65, %v55, 0
    %72 = vmatprep.subr.mxu0 0.0
    %73 = vmatpush1.msra.mxu0 %v56
    %74 = vmatprep.subr.mxu0 0.0
    %75 = vmatpush1.msra.mxu0 %v57
    %76 = vmatprep.subr.mxu0 0.0
    %77 = vmatpush1.msra.mxu0 0.0
    %78 = vmatprep.subr.mxu0 0.0
    %79 = vmatpush1.msra.mxu0 0.0
    %80 = vmatprep.subr.mxu0 0.0
    %81 = vmatpush1.msra.mxu0 0.0
    %82 = vmatprep.subr.mxu0 0.0
    %83 = vmatpush1.msra.mxu0 0.0
    %84 = vmatprep.subr.mxu0 0.0
    %85 = vmatpush1.msra.mxu0 0.0
    %86 = vmatprep.subr.mxu0 0.0
    %87 = vmatpush1.msra.mxu0 0.0
    %88 = vmatprep.subr.mxu0 0.0
    %89 = vmatpush1.msra.mxu0 0.0
    %90 = vmatprep.subr.mxu0 0.0
    %91 = vmatpush1.msra.mxu0 0.0
    %92 = vmatprep.subr.mxu0 0.0
    %93 = vmatpush1.msra.mxu0 0.0
    %94 = vmatprep.subr.mxu0 0.0
    %95 = vmatpush1.msra.mxu0 0.0
    %96 = vmatprep.subr.mxu0 0.0
    %97 = vmatpush1.msra.mxu0 0.0
    %98 = vmatprep.subr.mxu0 0.0
    %99 = vmatpush1.msra.mxu0 0.0
    %100 = vmatprep.subr.mxu0 0.0
    %101 = vmatpush1.msra.mxu0 0.0
    %102 = vmatprep.subr.mxu0 0.0
    %103 = vmatpush1.msra.mxu0 0.0
    %104 = vmatprep.subr.mxu0 0.0
    %105 = vmatpush1.msra.mxu0 0.0
    %106 = vmatprep.subr.mxu0 0.0
    %107 = vmatpush1.msra.mxu0 0.0
    %108 = vmatprep.subr.mxu0 0.0
    %109 = vmatpush1.msra.mxu0 0.0
    %110 = vmatprep.subr.mxu0 0.0
    %111 = vmatpush1.msra.mxu0 0.0
    %112 = vmatprep.subr.mxu0 0.0
    %113 = vmatpush1.msra.mxu0 0.0
    %114 = vmatprep.subr.mxu0 0.0
    %115 = vmatpush1.msra.mxu0 0.0
    %116 = vmatprep.subr.mxu0 0.0
    %117 = vmatpush1.msra.mxu0 0.0
    %118 = vmatprep.subr.mxu0 0.0
    %119 = vmatpush1.msra.mxu0 0.0
    %120 = vmatprep.subr.mxu0 0.0
    %121 = vmatpush1.msra.mxu0 0.0
    %122 = vmatprep.subr.mxu0 0.0
    %123 = vmatpush1.msra.mxu0 0.0
    %124 = vmatprep.subr.mxu0 0.0
    %125 = vmatpush1.msra.mxu0 0.0
    %126 = vmatprep.subr.mxu0 0.0
    %127 = vmatpush1.msra.mxu0 0.0
    %128 = vmatprep.subr.mxu0 0.0
    %129 = vmatpush1.msra.mxu0 0.0
    %130 = vmatprep.subr.mxu0 0.0
    %131 = vmatpush1.msra.mxu0 0.0
    %132 = vmatprep.subr.mxu0 0.0
    %133 = vmatpush1.msra.mxu0 0.0
    %134 = vmatprep.subr.mxu0 0.0
    %135 = vmatpush1.msra.mxu0 0.0
    %136 = vmatprep.mubr.f32.mxu0 0.0
    %137 = vmatmul.mubr.f32.gmra.mrb[0].mxu0 %v67
    %v138 = vpop.f32.mrb[0].mxu0
    %v139 = vadd.f32 %v63, %v138
    %v140 = vpop.f32.mrb[0].mxu0
    %141 = vmatprep.mubr.f32.mxu0 0.0
    %142 = vmatmul.mubr.f32.gmra.mrb[0].mxu0 %v70
    %v143 = vpop.f32.mrb[0].mxu0
    %v144 = vadd.f32 %v63, %v143
    %v145 = vpop.f32.mrb[0].mxu0
    %146 = vdwg.mxu0
    %vm147 = vcmask 261120
    %148 = vst.msk [vmem:[#allocation8] sm:$0xff] %vm147, %v139
    %149 = vst.msk [vmem:[#allocation8 + $0x8] sm:$0xff] %vm147, %v144
    // Predicated region
    $region26: #{tpu_custom_call.1} parent=1 // pred_check
      _
    $region27: #{tpu_custom_call.1} parent=1 // pred_check_branch
      %151 = sbr.rel (0) target = $region29
    $region28: #{tpu_custom_call.1} parent=1 // pred_region
      %s153 = ssub.s32 256, 256
      %154 = vsyncadd [#allocation4], %s153
      %s155 = sshll.u32 [#allocation8], 4
      %s156 = int_to_ptr.vmem [resolvable:$true] %s155
      %161 = dma.vmem_to_hbm [thread:$0]  %s156, 256, %s3, [#allocation4], 128, 128, 8
    $region29: #{tpu_custom_call.1} parent=1 // pred_fallthru
      _
    // Predicated region
    $region30: #{tpu_custom_call.1} parent=1 // pred_check
      _
    $region31: #{tpu_custom_call.1} parent=1 // pred_check_branch
      %163 = sbr.rel (0) target = $region33
    $region32: #{tpu_custom_call.1} parent=1 // pred_region
      %164 = dma.done [#allocation4], 256
    $region33: #{tpu_custom_call.1} parent=1 // pred_fallthru
      _
    %165 = vsyncpa [#allocation3], 1
    %166 = vsyncpa [#allocation6], 1
    %167 = vsyncpa [#allocation4], 1

</llo_original>
